<compile_context>
chip_gen: v7x
topology: tpu7x:2x2x1
jax: 0.10.0
libtpu: 0.0.40
codegen_flags: <defaults>
</compile_context>

<pallas_src>
import jax
import jax.numpy as jnp
import numpy as np
from jax.experimental import pallas as pl
from jax.experimental.pallas import tpu as pltpu

EPSILON = 1e-7
_XYZ_REF = (0.95047, 1.0, 1.08883)   # D65 white point (kornia convention)
_L_SHIFT = 50.0                      # constant shift on L before sum/sumsq (conditioning only)
_INV_CBRT_MAGIC = 0x54A2FC7E         # exponent-trick magic for x**(-1/3) initial guess


def _pow(x, p):
    # pow via exp/log (EUP); the 1e-12 clamp keeps log well-defined for the non-selected
    # branch of the surrounding jnp.where.
    return jnp.exp(p * jnp.log(jnp.maximum(x, 1e-12)))


def _srgb_to_linear(c):
    return jnp.where(c > 0.04045, _pow((c + 0.055) * (1.0 / 1.055), 2.4), c * (1.0 / 12.92))


def _linear_to_srgb(c):
    return jnp.where(c > 0.0031308, 1.055 * _pow(c, 1.0 / 2.4) - 0.055, 12.92 * c)


def _fast_cbrt(t):
    """cbrt(t) for t > 0 without exp/log (VPU-only): exponent bit-trick initial guess for
    r = t**(-1/3), 3 multiply-only Newton steps r <- r*(4/3 - t/3 * r^3), then t * r * r.
    Initial guess error <~4%, after 3 Newton steps relative error ~1e-8."""
    bits = pltpu.bitcast(t, jnp.int32)
    # bits // 3 done via float multiply (error <= a few tens of ulps of the bit pattern,
    # i.e. ~5e-6 relative on the guess -- negligible).
    third = (bits.astype(jnp.float32) * (1.0 / 3.0)).astype(jnp.int32)
    r = pltpu.bitcast(jnp.int32(_INV_CBRT_MAGIC) - third, jnp.float32)
    c = t * (1.0 / 3.0)
    for _ in range(3):
        r = r * (4.0 / 3.0 - c * (r * r * r))
    return t * (r * r)


def _f_lab(t):
    # kernel-side f() of CIELAB: cube root on the VPU instead of the EUP.
    return jnp.where(t > 0.008856, _fast_cbrt(jnp.maximum(t, 1e-12)), 7.787 * t + 4.0 / 29.0)


def _f_lab_ref(t):
    # reference-side f() (exp/log pow); agrees with _f_lab to ~1e-7.
    return jnp.where(t > 0.008856, _pow(t, 1.0 / 3.0), 7.787 * t + 4.0 / 29.0)


def _f_lab_inv(t):
    t3 = t * t * t
    return jnp.where(t3 > 0.008856, t3, (t - 4.0 / 29.0) * (1.0 / 7.787))


# ----------------------------- pass 1: rgb -> lab + partial stats -----------------------------
def _rgb_to_lab_stats_kernel(x_ref, lab_ref, stats_ref):
    # x_ref / lab_ref: (3, tile_rows, lanes) for the current (image, tile).
    # stats_ref: (6, lanes) resident accumulator across the tile axis
    #            rows 0..2 = sum(L', a, b), rows 3..5 = sum of squares (L' = L - _L_SHIFT).
    @pl.when(pl.program_id(1) == 0)
    def _():
        stats_ref[...] = jnp.zeros_like(stats_ref)

    r = x_ref[0].astype(jnp.float32)
    g = x_ref[1].astype(jnp.float32)
    b = x_ref[2].astype(jnp.float32)

    rl, gl, bl = _srgb_to_linear(r), _srgb_to_linear(g), _srgb_to_linear(b)
    X = 0.412453 * rl + 0.357580 * gl + 0.180423 * bl
    Y = 0.212671 * rl + 0.715160 * gl + 0.072169 * bl
    Z = 0.019334 * rl + 0.119193 * gl + 0.950227 * bl

    fX = _f_lab(X * (1.0 / _XYZ_REF[0]))
    fY = _f_lab(Y * (1.0 / _XYZ_REF[1]))
    fZ = _f_lab(Z * (1.0 / _XYZ_REF[2]))

    # L stored shifted by _L_SHIFT: the shift cancels exactly in (x - mean), it only improves
    # the conditioning of the one-pass sumsq.
    Lc = 116.0 * fY - (16.0 + _L_SHIFT)
    Ac = 500.0 * (fX - fY)
    Bc = 200.0 * (fY - fZ)

    lab_ref[0] = Lc
    lab_ref[1] = Ac
    lab_ref[2] = Bc

    # Sublane-reduced partial sums (lane reduction finished cheaply in JAX).
    partial = jnp.concatenate(
        [jnp.sum(Lc, axis=0, keepdims=True),
         jnp.sum(Ac, axis=0, keepdims=True),
         jnp.sum(Bc, axis=0, keepdims=True),
         jnp.sum(Lc * Lc, axis=0, keepdims=True),
         jnp.sum(Ac * Ac, axis=0, keepdims=True),
         jnp.sum(Bc * Bc, axis=0, keepdims=True)], axis=0)
    stats_ref[...] += partial


# --------------------------- pass 2: per-channel FMA + lab -> rgb ----------------------------
def _apply_lab_to_rgb_kernel(so_ref, lab_ref, o_ref):
    # so_ref: scalar-prefetched SMEM (B, 2, 3): row 0 = scale, row 1 = offset (per image).
    b = pl.program_id(0)
    Ln = lab_ref[0] * so_ref[b, 0, 0] + so_ref[b, 1, 0]
    An = lab_ref[1] * so_ref[b, 0, 1] + so_ref[b, 1, 1]
    Bn = lab_ref[2] * so_ref[b, 0, 2] + so_ref[b, 1, 2]

    fy = (Ln + 16.0) * (1.0 / 116.0)
    fx = An * (1.0 / 500.0) + fy
    fz = jnp.maximum(fy - Bn * (1.0 / 200.0), 0.0)
    X2 = _f_lab_inv(fx) * _XYZ_REF[0]
    Y2 = _f_lab_inv(fy) * _XYZ_REF[1]
    Z2 = _f_lab_inv(fz) * _XYZ_REF[2]

    r2 = jnp.clip(3.2404813432005266 * X2 - 1.5371515162713185 * Y2 - 0.49853632616888777 * Z2, 0.0, 1.0)
    g2 = jnp.clip(-0.9692549499965682 * X2 + 1.8759900014898907 * Y2 + 0.0415559265582928 * Z2, 0.0, 1.0)
    b2 = jnp.clip(0.0556466391351772 * X2 - 0.2040413383665112 * Y2 + 1.0573110696453443 * Z2, 0.0, 1.0)

    # full-plane, unmasked, lane-dense stores
    o_ref[0] = _linear_to_srgb(r2).astype(o_ref.dtype)
    o_ref[1] = _linear_to_srgb(g2).astype(o_ref.dtype)
    o_ref[2] = _linear_to_srgb(b2).astype(o_ref.dtype)


# ------------------------------------------ wrapper ------------------------------------------
def _factor_hw(hw):
    """Split HW = rows * lanes with lanes a multiple of 128 (lane-dense), preferring
    rows % 8 == 0 (sublane-dense). Falls back to (1, HW) if HW has no 128 factor."""
    best = None
    for lanes in (512, 256, 128, 1024, 2048, 4096):
        if hw % lanes == 0:
            rows = hw // lanes
            if rows % 8 == 0:
                return rows, lanes
            if best is None:
                best = (rows, lanes)
    return best if best is not None else (1, hw)


def _choose_tile_rows(rows, max_tile_rows):
    """Largest divisor of rows that is a multiple of 8 and <= max_tile_rows (keeps VMEM per
    grid step image-size independent). Falls back to the whole image if rows % 8 != 0."""
    if rows % 8 != 0:
        return rows
    start = min(max_tile_rows - max_tile_rows % 8, rows)
    for cand in range(start, 7, -8):
        if rows % cand == 0:
            return cand
    return rows


def _vmem_limit_bytes(block_bytes):
    # Never request the full physical VMEM (leave headroom for Mosaic scratch/semaphores);
    # generation-aware via get_tpu_info (v5e/v6e: 128 MiB, v7x: 64 MiB per TensorCore).
    try:
        phys = int(pltpu.get_tpu_info().vmem_capacity_bytes)
    except Exception:
        phys = 64 * 1024 * 1024
    cap = (phys * 7) // 8
    needed = 16 * block_bytes + (4 << 20)   # dbl-buffered in/out blocks + plane temporaries
    return int(min(max(needed, 32 * 1024 * 1024), cap))


def labnorm(x, sigma, mu, *, max_tile_rows=256):
    """x: (B, 3, H, W) float32 RGB in [0, 1]; sigma/mu: (3,) learned params."""
    B, C, H, W = x.shape
    assert C == 3
    HW = H * W
    rows, lanes = _factor_hw(HW)
    tile_rows = _choose_tile_rows(rows, max_tile_rows)
    n_tiles = rows // tile_rows
    xf = x.reshape(B, C, rows, lanes)

    vmem_limit = _vmem_limit_bytes(3 * tile_rows * lanes * 4)

    # ---- pass 1: rgb -> lab (f32 HBM intermediate) + per-(image, channel) partial stats ----
    lab_f32, stats = pl.pallas_call(
        _rgb_to_lab_stats_kernel,
        out_shape=(jax.ShapeDtypeStruct((B, C, rows, lanes), jnp.float32),
                   jax.ShapeDtypeStruct((B, 6, lanes), jnp.float32)),
        grid_spec=pltpu.PrefetchScalarGridSpec(
            num_scalar_prefetch=0,
            grid=(B, n_tiles),
            in_specs=[pl.BlockSpec((None, C, tile_rows, lanes), lambda b, t: (b, 0, t, 0))],
            out_specs=[pl.BlockSpec((None, C, tile_rows, lanes), lambda b, t: (b, 0, t, 0)),
                       pl.BlockSpec((None, 6, lanes), lambda b, t: (b, 0, 0))],
        ),
        compiler_params=pltpu.CompilerParams(
            dimension_semantics=("parallel", "arbitrary"),
            vmem_limit_bytes=vmem_limit),
    )(xf)

    # ---- tiny per-image scalar math in JAX: fold stats + learned params into (scale, offset)
    n = float(HW)
    sums = jnp.sum(stats[:, 0:3, :], axis=-1)                       # (B, 3)
    sumsq = jnp.sum(stats[:, 3:6, :], axis=-1)                      # (B, 3)
    mean = sums * (1.0 / n)                                         # (L is shifted by _L_SHIFT)
    var = (sumsq - n * mean * mean) * (1.0 / max(n - 1.0, 1.0))     # unbiased, torch .std()
    sd = jnp.sqrt(jnp.maximum(var, 0.0)) + EPSILON
    scale = sigma.astype(jnp.float32)[None, :] / sd                 # (B, 3)
    offset = mu.astype(jnp.float32)[None, :] - mean * scale         # shift cancels here
    so = jnp.stack([scale, offset], axis=1)                         # (B, 2, 3)

    # ---- pass 2: per-channel FMA + lab -> rgb ----
    out = pl.pallas_call(
        _apply_lab_to_rgb_kernel,
        out_shape=jax.ShapeDtypeStruct((B, C, rows, lanes), x.dtype),
        grid_spec=pltpu.PrefetchScalarGridSpec(
            num_scalar_prefetch=1,
            grid=(B, n_tiles),
            in_specs=[pl.BlockSpec((None, C, tile_rows, lanes), lambda b, t, _so: (b, 0, t, 0))],
            out_specs=pl.BlockSpec((None, C, tile_rows, lanes), lambda b, t, _so: (b, 0, t, 0)),
        ),
        compiler_params=pltpu.CompilerParams(
            dimension_semantics=("parallel", "parallel"),
            vmem_limit_bytes=vmem_limit),
    )(so, lab_f32)
    return out.reshape(B, C, H, W)


# ---------------- pure-JAX reference (same math, two-pass std) for a sanity check ----------------
def labnorm_ref(x, sigma_p, mu_p):
    r, g, b = x[:, 0], x[:, 1], x[:, 2]
    rl, gl, bl = _srgb_to_linear(r), _srgb_to_linear(g), _srgb_to_linear(b)
    X = 0.412453 * rl + 0.357580 * gl + 0.180423 * bl
    Y = 0.212671 * rl + 0.715160 * gl + 0.072169 * bl
    Z = 0.019334 * rl + 0.119193 * gl + 0.950227 * bl
    fX, fY, fZ = _f_lab_ref(X / _XYZ_REF[0]), _f_lab_ref(Y / _XYZ_REF[1]), _f_lab_ref(Z / _XYZ_REF[2])
    lab = jnp.stack([116.0 * fY - 16.0, 500.0 * (fX - fY), 200.0 * (fY - fZ)], axis=1)

    mu = lab.mean(axis=(2, 3), keepdims=True)
    sd = jnp.sqrt(((lab - mu) ** 2).sum(axis=(2, 3), keepdims=True)
                  / (lab.shape[2] * lab.shape[3] - 1))
    labn = (lab - mu) / (sd + EPSILON) * sigma_p[None, :, None, None] + mu_p[None, :, None, None]

    fy = (labn[:, 0] + 16.0) / 116.0
    fx = labn[:, 1] / 500.0 + fy
    fz = jnp.maximum(fy - labn[:, 2] / 200.0, 0.0)
    X2, Y2, Z2 = _f_lab_inv(fx) * _XYZ_REF[0], _f_lab_inv(fy) * _XYZ_REF[1], _f_lab_inv(fz) * _XYZ_REF[2]
    r2 = 3.2404813432005266 * X2 - 1.5371515162713185 * Y2 - 0.49853632616888777 * Z2
    g2 = -0.9692549499965682 * X2 + 1.8759900014898907 * Y2 + 0.0415559265582928 * Z2
    b2 = 0.0556466391351772 * X2 - 0.2040413383665112 * Y2 + 1.0573110696453443 * Z2
    rgb = jnp.clip(jnp.stack([r2, g2, b2], axis=1), 0.0, 1.0)
    return _linear_to_srgb(rgb)


if __name__ == "__main__":
    # deterministic params, matching LabNorm.__init__
    sigma = jnp.array([22.0, 8.0, 9.0], dtype=jnp.float32)
    mu = jnp.array([54.0, 24.0, -21.0], dtype=jnp.float32)

    key = jax.random.PRNGKey(0)
    k1, k2, k3 = jax.random.split(key, 3)

    # primary small shape (HW=256 -> (1, 256) lane-dense fallback, single tile)
    x1 = jax.random.uniform(k1, (2, 3, 16, 16), dtype=jnp.float32)
    out1 = jax.block_until_ready(labnorm(x1, sigma, mu))
    ref1 = jax.block_until_ready(labnorm_ref(x1, sigma, mu))
    np.testing.assert_allclose(np.asarray(out1), np.asarray(ref1), rtol=1e-3, atol=1e-3)

    # fully (8,128)-dense planes: 64*64 -> (8, 512), single tile
    x2 = jax.random.uniform(k2, (2, 3, 64, 64), dtype=jnp.float32)
    out2 = jax.block_until_ready(labnorm(x2, sigma, mu))
    ref2 = jax.block_until_ready(labnorm_ref(x2, sigma, mu))
    np.testing.assert_allclose(np.asarray(out2), np.asarray(ref2), rtol=1e-3, atol=1e-3)

    # multi-tile path (128*128 -> rows=32, tile_rows=8 -> 4 tiles/image): exercises the
    # resident stats accumulator across the "arbitrary" tile axis.
    x3 = jax.random.uniform(k3, (2, 3, 128, 128), dtype=jnp.float32)
    out3 = jax.block_until_ready(labnorm(x3, sigma, mu, max_tile_rows=8))
    ref3 = jax.block_until_ready(labnorm_ref(x3, sigma, mu))
    np.testing.assert_allclose(np.asarray(out3), np.asarray(ref3), rtol=1e-3, atol=1e-3)

    print("KERNEL_OK")
</pallas_src>

<mosaic_0001>
module attributes {stable_mosaic.version = 11 : i64} {
  func.func @_rgb_to_lab_stats_kernel(%arg0: i32, %arg1: i32, %arg2: memref<1x3x1x256xf32, #tpu.memory_space<vmem>>, %arg3: memref<1x3x1x256xf32, #tpu.memory_space<vmem>>, %arg4: memref<1x6x256xf32, #tpu.memory_space<vmem>>) attributes {dimension_semantics = [#tpu.dimension_semantics<parallel>, #tpu.dimension_semantics<arbitrary>], iteration_bounds = array<i64: 2, 1>, scalar_prefetch = 0 : i64, scratch_operands = 0 : i64, tpu.core_type = #tpu.core_type<tc>, window_params = [{transform_indices = @transform_0, window_bounds = array<i64: 1, 3, 1, 256>}, {transform_indices = @transform_1, window_bounds = array<i64: 1, 3, 1, 256>}, {transform_indices = @transform_2, window_bounds = array<i64: 1, 6, 256>}]} {
    %c0_i32 = arith.constant 0 : i32
    %0 = arith.cmpi eq, %arg1, %c0_i32 : i32
    %1 = arith.extui %0 : i1 to i32
    %c0_i32_0 = arith.constant 0 : i32
    %2 = arith.cmpi ne, %1, %c0_i32_0 : i32
    scf.if %2 {
      %cst_96 = arith.constant 0.000000e+00 : f32
      %242 = vector.broadcast %cst_96 : f32 to vector<6x256xf32>
      %c0_97 = arith.constant 0 : index
      %c0_98 = arith.constant 0 : index
      %c0_99 = arith.constant 0 : index
      %243 = vector.load %arg4[%c0_97, %c0_98, %c0_99] : memref<1x6x256xf32, #tpu.memory_space<vmem>>, vector<1x6x256xf32>
      %244 = vector.shape_cast %243 : vector<1x6x256xf32> to vector<6x256xf32>
      %245 = vector.shape_cast %242 : vector<6x256xf32> to vector<1x6x256xf32>
      tpu.vector_store %arg4[%c0_97, %c0_98, %c0_99], %245 {strides = array<i32>} : memref<1x6x256xf32, #tpu.memory_space<vmem>>, vector<1x6x256xf32>,
    } else {
    }
    %c0 = arith.constant 0 : index
    %c0_1 = arith.constant 0 : index
    %c0_2 = arith.constant 0 : index
    %c0_3 = arith.constant 0 : index
    %3 = vector.load %arg2[%c0, %c0_1, %c0_2, %c0_3] : memref<1x3x1x256xf32, #tpu.memory_space<vmem>>, vector<1x1x1x256xf32>
    %4 = vector.shape_cast %3 : vector<1x1x1x256xf32> to vector<1x256xf32>
    %c0_4 = arith.constant 0 : index
    %c1 = arith.constant 1 : index
    %c0_5 = arith.constant 0 : index
    %c0_6 = arith.constant 0 : index
    %5 = vector.load %arg2[%c0_4, %c1, %c0_5, %c0_6] : memref<1x3x1x256xf32, #tpu.memory_space<vmem>>, vector<1x1x1x256xf32>
    %6 = vector.shape_cast %5 : vector<1x1x1x256xf32> to vector<1x256xf32>
    %c0_7 = arith.constant 0 : index
    %c2 = arith.constant 2 : index
    %c0_8 = arith.constant 0 : index
    %c0_9 = arith.constant 0 : index
    %7 = vector.load %arg2[%c0_7, %c2, %c0_8, %c0_9] : memref<1x3x1x256xf32, #tpu.memory_space<vmem>>, vector<1x1x1x256xf32>
    %8 = vector.shape_cast %7 : vector<1x1x1x256xf32> to vector<1x256xf32>
    %cst = arith.constant 4.045000e-02 : f32
    %9 = vector.broadcast %cst : f32 to vector<1x256xf32>
    %10 = arith.cmpf ogt, %4, %9 : vector<1x256xf32>
    %cst_10 = arith.constant 5.500000e-02 : f32
    %11 = vector.broadcast %cst_10 : f32 to vector<1x256xf32>
    %12 = arith.addf %4, %11 : vector<1x256xf32>
    %cst_11 = arith.constant 0.947867274 : f32
    %13 = vector.broadcast %cst_11 : f32 to vector<1x256xf32>
    %14 = arith.mulf %12, %13 : vector<1x256xf32>
    %cst_12 = arith.constant 9.99999996E-13 : f32
    %15 = vector.broadcast %cst_12 : f32 to vector<1x256xf32>
    %16 = arith.maximumf %14, %15 : vector<1x256xf32>
    %17 = math.log %16 : vector<1x256xf32>
    %cst_13 = arith.constant 2.400000e+00 : f32
    %18 = vector.broadcast %cst_13 : f32 to vector<1x256xf32>
    %19 = arith.mulf %18, %17 : vector<1x256xf32>
    %20 = math.exp %19 : vector<1x256xf32>
    %cst_14 = arith.constant 0.0773993805 : f32
    %21 = vector.broadcast %cst_14 : f32 to vector<1x256xf32>
    %22 = arith.mulf %4, %21 : vector<1x256xf32>
    %23 = arith.select %10, %20, %22 : vector<1x256xi1>, vector<1x256xf32>
    %cst_15 = arith.constant 4.045000e-02 : f32
    %24 = vector.broadcast %cst_15 : f32 to vector<1x256xf32>
    %25 = arith.cmpf ogt, %6, %24 : vector<1x256xf32>
    %cst_16 = arith.constant 5.500000e-02 : f32
    %26 = vector.broadcast %cst_16 : f32 to vector<1x256xf32>
    %27 = arith.addf %6, %26 : vector<1x256xf32>
    %cst_17 = arith.constant 0.947867274 : f32
    %28 = vector.broadcast %cst_17 : f32 to vector<1x256xf32>
    %29 = arith.mulf %27, %28 : vector<1x256xf32>
    %cst_18 = arith.constant 9.99999996E-13 : f32
    %30 = vector.broadcast %cst_18 : f32 to vector<1x256xf32>
    %31 = arith.maximumf %29, %30 : vector<1x256xf32>
    %32 = math.log %31 : vector<1x256xf32>
    %cst_19 = arith.constant 2.400000e+00 : f32
    %33 = vector.broadcast %cst_19 : f32 to vector<1x256xf32>
    %34 = arith.mulf %33, %32 : vector<1x256xf32>
    %35 = math.exp %34 : vector<1x256xf32>
    %cst_20 = arith.constant 0.0773993805 : f32
    %36 = vector.broadcast %cst_20 : f32 to vector<1x256xf32>
    %37 = arith.mulf %6, %36 : vector<1x256xf32>
    %38 = arith.select %25, %35, %37 : vector<1x256xi1>, vector<1x256xf32>
    %cst_21 = arith.constant 4.045000e-02 : f32
    %39 = vector.broadcast %cst_21 : f32 to vector<1x256xf32>
    %40 = arith.cmpf ogt, %8, %39 : vector<1x256xf32>
    %cst_22 = arith.constant 5.500000e-02 : f32
    %41 = vector.broadcast %cst_22 : f32 to vector<1x256xf32>
    %42 = arith.addf %8, %41 : vector<1x256xf32>
    %cst_23 = arith.constant 0.947867274 : f32
    %43 = vector.broadcast %cst_23 : f32 to vector<1x256xf32>
    %44 = arith.mulf %42, %43 : vector<1x256xf32>
    %cst_24 = arith.constant 9.99999996E-13 : f32
    %45 = vector.broadcast %cst_24 : f32 to vector<1x256xf32>
    %46 = arith.maximumf %44, %45 : vector<1x256xf32>
    %47 = math.log %46 : vector<1x256xf32>
    %cst_25 = arith.constant 2.400000e+00 : f32
    %48 = vector.broadcast %cst_25 : f32 to vector<1x256xf32>
    %49 = arith.mulf %48, %47 : vector<1x256xf32>
    %50 = math.exp %49 : vector<1x256xf32>
    %cst_26 = arith.constant 0.0773993805 : f32
    %51 = vector.broadcast %cst_26 : f32 to vector<1x256xf32>
    %52 = arith.mulf %8, %51 : vector<1x256xf32>
    %53 = arith.select %40, %50, %52 : vector<1x256xi1>, vector<1x256xf32>
    %cst_27 = arith.constant 4.124530e-01 : f32
    %54 = vector.broadcast %cst_27 : f32 to vector<1x256xf32>
    %55 = arith.mulf %54, %23 : vector<1x256xf32>
    %cst_28 = arith.constant 3.575800e-01 : f32
    %56 = vector.broadcast %cst_28 : f32 to vector<1x256xf32>
    %57 = arith.mulf %56, %38 : vector<1x256xf32>
    %58 = arith.addf %55, %57 : vector<1x256xf32>
    %cst_29 = arith.constant 1.804230e-01 : f32
    %59 = vector.broadcast %cst_29 : f32 to vector<1x256xf32>
    %60 = arith.mulf %59, %53 : vector<1x256xf32>
    %61 = arith.addf %58, %60 : vector<1x256xf32>
    %cst_30 = arith.constant 2.126710e-01 : f32
    %62 = vector.broadcast %cst_30 : f32 to vector<1x256xf32>
    %63 = arith.mulf %62, %23 : vector<1x256xf32>
    %cst_31 = arith.constant 7.151600e-01 : f32
    %64 = vector.broadcast %cst_31 : f32 to vector<1x256xf32>
    %65 = arith.mulf %64, %38 : vector<1x256xf32>
    %66 = arith.addf %63, %65 : vector<1x256xf32>
    %cst_32 = arith.constant 7.216900e-02 : f32
    %67 = vector.broadcast %cst_32 : f32 to vector<1x256xf32>
    %68 = arith.mulf %67, %53 : vector<1x256xf32>
    %69 = arith.addf %66, %68 : vector<1x256xf32>
    %cst_33 = arith.constant 1.933400e-02 : f32
    %70 = vector.broadcast %cst_33 : f32 to vector<1x256xf32>
    %71 = arith.mulf %70, %23 : vector<1x256xf32>
    %cst_34 = arith.constant 1.191930e-01 : f32
    %72 = vector.broadcast %cst_34 : f32 to vector<1x256xf32>
    %73 = arith.mulf %72, %38 : vector<1x256xf32>
    %74 = arith.addf %71, %73 : vector<1x256xf32>
    %cst_35 = arith.constant 9.502270e-01 : f32
    %75 = vector.broadcast %cst_35 : f32 to vector<1x256xf32>
    %76 = arith.mulf %75, %53 : vector<1x256xf32>
    %77 = arith.addf %74, %76 : vector<1x256xf32>
    %cst_36 = arith.constant 1.05211103 : f32
    %78 = vector.broadcast %cst_36 : f32 to vector<1x256xf32>
    %79 = arith.mulf %61, %78 : vector<1x256xf32>
    %cst_37 = arith.constant 8.856000e-03 : f32
    %80 = vector.broadcast %cst_37 : f32 to vector<1x256xf32>
    %81 = arith.cmpf ogt, %79, %80 : vector<1x256xf32>
    %cst_38 = arith.constant 9.99999996E-13 : f32
    %82 = vector.broadcast %cst_38 : f32 to vector<1x256xf32>
    %83 = arith.maximumf %79, %82 : vector<1x256xf32>
    %84 = tpu.bitcast %83 : vector<1x256xf32> -> vector<1x256xi32>
    %85 = arith.sitofp %84 : vector<1x256xi32> to vector<1x256xf32>
    %cst_39 = arith.constant 0.333333343 : f32
    %86 = vector.broadcast %cst_39 : f32 to vector<1x256xf32>
    %87 = arith.mulf %85, %86 : vector<1x256xf32>
    %88 = arith.fptosi %87 : vector<1x256xf32> to vector<1x256xi32>
    %c1419967614_i32 = arith.constant 1419967614 : i32
    %89 = vector.broadcast %c1419967614_i32 : i32 to vector<1x256xi32>
    %90 = arith.subi %89, %88 : vector<1x256xi32>
    %91 = tpu.bitcast %90 : vector<1x256xi32> -> vector<1x256xf32>
    %cst_40 = arith.constant 0.333333343 : f32
    %92 = vector.broadcast %cst_40 : f32 to vector<1x256xf32>
    %93 = arith.mulf %83, %92 : vector<1x256xf32>
    %94 = arith.mulf %91, %91 : vector<1x256xf32>
    %95 = arith.mulf %94, %91 : vector<1x256xf32>
    %96 = arith.mulf %93, %95 : vector<1x256xf32>
    %cst_41 = arith.constant 1.33333337 : f32
    %97 = vector.broadcast %cst_41 : f32 to vector<1x256xf32>
    %98 = arith.subf %97, %96 : vector<1x256xf32>
    %99 = arith.mulf %91, %98 : vector<1x256xf32>
    %100 = arith.mulf %99, %99 : vector<1x256xf32>
    %101 = arith.mulf %100, %99 : vector<1x256xf32>
    %102 = arith.mulf %93, %101 : vector<1x256xf32>
    %cst_42 = arith.constant 1.33333337 : f32
    %103 = vector.broadcast %cst_42 : f32 to vector<1x256xf32>
    %104 = arith.subf %103, %102 : vector<1x256xf32>
    %105 = arith.mulf %99, %104 : vector<1x256xf32>
    %106 = arith.mulf %105, %105 : vector<1x256xf32>
    %107 = arith.mulf %106, %105 : vector<1x256xf32>
    %108 = arith.mulf %93, %107 : vector<1x256xf32>
    %cst_43 = arith.constant 1.33333337 : f32
    %109 = vector.broadcast %cst_43 : f32 to vector<1x256xf32>
    %110 = arith.subf %109, %108 : vector<1x256xf32>
    %111 = arith.mulf %105, %110 : vector<1x256xf32>
    %112 = arith.mulf %111, %111 : vector<1x256xf32>
    %113 = arith.mulf %83, %112 : vector<1x256xf32>
    %cst_44 = arith.constant 7.787000e+00 : f32
    %114 = vector.broadcast %cst_44 : f32 to vector<1x256xf32>
    %115 = arith.mulf %114, %79 : vector<1x256xf32>
    %cst_45 = arith.constant 0.137931034 : f32
    %116 = vector.broadcast %cst_45 : f32 to vector<1x256xf32>
    %117 = arith.addf %115, %116 : vector<1x256xf32>
    %118 = arith.select %81, %113, %117 : vector<1x256xi1>, vector<1x256xf32>
    %cst_46 = arith.constant 1.000000e+00 : f32
    %119 = vector.broadcast %cst_46 : f32 to vector<1x256xf32>
    %120 = arith.mulf %69, %119 : vector<1x256xf32>
    %cst_47 = arith.constant 8.856000e-03 : f32
    %121 = vector.broadcast %cst_47 : f32 to vector<1x256xf32>
    %122 = arith.cmpf ogt, %120, %121 : vector<1x256xf32>
    %cst_48 = arith.constant 9.99999996E-13 : f32
    %123 = vector.broadcast %cst_48 : f32 to vector<1x256xf32>
    %124 = arith.maximumf %120, %123 : vector<1x256xf32>
    %125 = tpu.bitcast %124 : vector<1x256xf32> -> vector<1x256xi32>
    %126 = arith.sitofp %125 : vector<1x256xi32> to vector<1x256xf32>
    %cst_49 = arith.constant 0.333333343 : f32
    %127 = vector.broadcast %cst_49 : f32 to vector<1x256xf32>
    %128 = arith.mulf %126, %127 : vector<1x256xf32>
    %129 = arith.fptosi %128 : vector<1x256xf32> to vector<1x256xi32>
    %c1419967614_i32_50 = arith.constant 1419967614 : i32
    %130 = vector.broadcast %c1419967614_i32_50 : i32 to vector<1x256xi32>
    %131 = arith.subi %130, %129 : vector<1x256xi32>
    %132 = tpu.bitcast %131 : vector<1x256xi32> -> vector<1x256xf32>
    %cst_51 = arith.constant 0.333333343 : f32
    %133 = vector.broadcast %cst_51 : f32 to vector<1x256xf32>
    %134 = arith.mulf %124, %133 : vector<1x256xf32>
    %135 = arith.mulf %132, %132 : vector<1x256xf32>
    %136 = arith.mulf %135, %132 : vector<1x256xf32>
    %137 = arith.mulf %134, %136 : vector<1x256xf32>
    %cst_52 = arith.constant 1.33333337 : f32
    %138 = vector.broadcast %cst_52 : f32 to vector<1x256xf32>
    %139 = arith.subf %138, %137 : vector<1x256xf32>
    %140 = arith.mulf %132, %139 : vector<1x256xf32>
    %141 = arith.mulf %140, %140 : vector<1x256xf32>
    %142 = arith.mulf %141, %140 : vector<1x256xf32>
    %143 = arith.mulf %134, %142 : vector<1x256xf32>
    %cst_53 = arith.constant 1.33333337 : f32
    %144 = vector.broadcast %cst_53 : f32 to vector<1x256xf32>
    %145 = arith.subf %144, %143 : vector<1x256xf32>
    %146 = arith.mulf %140, %145 : vector<1x256xf32>
    %147 = arith.mulf %146, %146 : vector<1x256xf32>
    %148 = arith.mulf %147, %146 : vector<1x256xf32>
    %149 = arith.mulf %134, %148 : vector<1x256xf32>
    %cst_54 = arith.constant 1.33333337 : f32
    %150 = vector.broadcast %cst_54 : f32 to vector<1x256xf32>
    %151 = arith.subf %150, %149 : vector<1x256xf32>
    %152 = arith.mulf %146, %151 : vector<1x256xf32>
    %153 = arith.mulf %152, %152 : vector<1x256xf32>
    %154 = arith.mulf %124, %153 : vector<1x256xf32>
    %cst_55 = arith.constant 7.787000e+00 : f32
    %155 = vector.broadcast %cst_55 : f32 to vector<1x256xf32>
    %156 = arith.mulf %155, %120 : vector<1x256xf32>
    %cst_56 = arith.constant 0.137931034 : f32
    %157 = vector.broadcast %cst_56 : f32 to vector<1x256xf32>
    %158 = arith.addf %156, %157 : vector<1x256xf32>
    %159 = arith.select %122, %154, %158 : vector<1x256xi1>, vector<1x256xf32>
    %cst_57 = arith.constant 0.918417036 : f32
    %160 = vector.broadcast %cst_57 : f32 to vector<1x256xf32>
    %161 = arith.mulf %77, %160 : vector<1x256xf32>
    %cst_58 = arith.constant 8.856000e-03 : f32
    %162 = vector.broadcast %cst_58 : f32 to vector<1x256xf32>
    %163 = arith.cmpf ogt, %161, %162 : vector<1x256xf32>
    %cst_59 = arith.constant 9.99999996E-13 : f32
    %164 = vector.broadcast %cst_59 : f32 to vector<1x256xf32>
    %165 = arith.maximumf %161, %164 : vector<1x256xf32>
    %166 = tpu.bitcast %165 : vector<1x256xf32> -> vector<1x256xi32>
    %167 = arith.sitofp %166 : vector<1x256xi32> to vector<1x256xf32>
    %cst_60 = arith.constant 0.333333343 : f32
    %168 = vector.broadcast %cst_60 : f32 to vector<1x256xf32>
    %169 = arith.mulf %167, %168 : vector<1x256xf32>
    %170 = arith.fptosi %169 : vector<1x256xf32> to vector<1x256xi32>
    %c1419967614_i32_61 = arith.constant 1419967614 : i32
    %171 = vector.broadcast %c1419967614_i32_61 : i32 to vector<1x256xi32>
    %172 = arith.subi %171, %170 : vector<1x256xi32>
    %173 = tpu.bitcast %172 : vector<1x256xi32> -> vector<1x256xf32>
    %cst_62 = arith.constant 0.333333343 : f32
    %174 = vector.broadcast %cst_62 : f32 to vector<1x256xf32>
    %175 = arith.mulf %165, %174 : vector<1x256xf32>
    %176 = arith.mulf %173, %173 : vector<1x256xf32>
    %177 = arith.mulf %176, %173 : vector<1x256xf32>
    %178 = arith.mulf %175, %177 : vector<1x256xf32>
    %cst_63 = arith.constant 1.33333337 : f32
    %179 = vector.broadcast %cst_63 : f32 to vector<1x256xf32>
    %180 = arith.subf %179, %178 : vector<1x256xf32>
    %181 = arith.mulf %173, %180 : vector<1x256xf32>
    %182 = arith.mulf %181, %181 : vector<1x256xf32>
    %183 = arith.mulf %182, %181 : vector<1x256xf32>
    %184 = arith.mulf %175, %183 : vector<1x256xf32>
    %cst_64 = arith.constant 1.33333337 : f32
    %185 = vector.broadcast %cst_64 : f32 to vector<1x256xf32>
    %186 = arith.subf %185, %184 : vector<1x256xf32>
    %187 = arith.mulf %181, %186 : vector<1x256xf32>
    %188 = arith.mulf %187, %187 : vector<1x256xf32>
    %189 = arith.mulf %188, %187 : vector<1x256xf32>
    %190 = arith.mulf %175, %189 : vector<1x256xf32>
    %cst_65 = arith.constant 1.33333337 : f32
    %191 = vector.broadcast %cst_65 : f32 to vector<1x256xf32>
    %192 = arith.subf %191, %190 : vector<1x256xf32>
    %193 = arith.mulf %187, %192 : vector<1x256xf32>
    %194 = arith.mulf %193, %193 : vector<1x256xf32>
    %195 = arith.mulf %165, %194 : vector<1x256xf32>
    %cst_66 = arith.constant 7.787000e+00 : f32
    %196 = vector.broadcast %cst_66 : f32 to vector<1x256xf32>
    %197 = arith.mulf %196, %161 : vector<1x256xf32>
    %cst_67 = arith.constant 0.137931034 : f32
    %198 = vector.broadcast %cst_67 : f32 to vector<1x256xf32>
    %199 = arith.addf %197, %198 : vector<1x256xf32>
    %200 = arith.select %163, %195, %199 : vector<1x256xi1>, vector<1x256xf32>
    %cst_68 = arith.constant 1.160000e+02 : f32
    %201 = vector.broadcast %cst_68 : f32 to vector<1x256xf32>
    %202 = arith.mulf %201, %159 : vector<1x256xf32>
    %cst_69 = arith.constant 6.600000e+01 : f32
    %203 = vector.broadcast %cst_69 : f32 to vector<1x256xf32>
    %204 = arith.subf %202, %203 : vector<1x256xf32>
    %205 = arith.subf %118, %159 : vector<1x256xf32>
    %cst_70 = arith.constant 5.000000e+02 : f32
    %206 = vector.broadcast %cst_70 : f32 to vector<1x256xf32>
    %207 = arith.mulf %206, %205 : vector<1x256xf32>
    %208 = arith.subf %159, %200 : vector<1x256xf32>
    %cst_71 = arith.constant 2.000000e+02 : f32
    %209 = vector.broadcast %cst_71 : f32 to vector<1x256xf32>
    %210 = arith.mulf %209, %208 : vector<1x256xf32>
    %c0_72 = arith.constant 0 : index
    %c0_73 = arith.constant 0 : index
    %c0_74 = arith.constant 0 : index
    %c0_75 = arith.constant 0 : index
    %211 = vector.load %arg3[%c0_72, %c0_73, %c0_74, %c0_75] : memref<1x3x1x256xf32, #tpu.memory_space<vmem>>, vector<1x1x1x256xf32>
    %212 = vector.shape_cast %211 : vector<1x1x1x256xf32> to vector<1x256xf32>
    %213 = vector.shape_cast %204 : vector<1x256xf32> to vector<1x1x1x256xf32>
    tpu.vector_store %arg3[%c0_72, %c0_73, %c0_74, %c0_75], %213 {strides = array<i32>} : memref<1x3x1x256xf32, #tpu.memory_space<vmem>>, vector<1x1x1x256xf32>,
    %c0_76 = arith.constant 0 : index
    %c1_77 = arith.constant 1 : index
    %c0_78 = arith.constant 0 : index
    %c0_79 = arith.constant 0 : index
    %214 = vector.load %arg3[%c0_76, %c1_77, %c0_78, %c0_79] : memref<1x3x1x256xf32, #tpu.memory_space<vmem>>, vector<1x1x1x256xf32>
    %215 = vector.shape_cast %214 : vector<1x1x1x256xf32> to vector<1x256xf32>
    %216 = vector.shape_cast %207 : vector<1x256xf32> to vector<1x1x1x256xf32>
    tpu.vector_store %arg3[%c0_76, %c1_77, %c0_78, %c0_79], %216 {strides = array<i32>} : memref<1x3x1x256xf32, #tpu.memory_space<vmem>>, vector<1x1x1x256xf32>,
    %c0_80 = arith.constant 0 : index
    %c2_81 = arith.constant 2 : index
    %c0_82 = arith.constant 0 : index
    %c0_83 = arith.constant 0 : index
    %217 = vector.load %arg3[%c0_80, %c2_81, %c0_82, %c0_83] : memref<1x3x1x256xf32, #tpu.memory_space<vmem>>, vector<1x1x1x256xf32>
    %218 = vector.shape_cast %217 : vector<1x1x1x256xf32> to vector<1x256xf32>
    %219 = vector.shape_cast %210 : vector<1x256xf32> to vector<1x1x1x256xf32>
    tpu.vector_store %arg3[%c0_80, %c2_81, %c0_82, %c0_83], %219 {strides = array<i32>} : memref<1x3x1x256xf32, #tpu.memory_space<vmem>>, vector<1x1x1x256xf32>,
    %cst_84 = arith.constant dense<0.000000e+00> : vector<256xf32>
    %220 = vector.multi_reduction <add>, %204, %cst_84 [0] : vector<1x256xf32> to vector<256xf32>
    %221 = vector.shape_cast %220 : vector<256xf32> to vector<1x256xf32>
    %cst_85 = arith.constant dense<0.000000e+00> : vector<256xf32>
    %222 = vector.multi_reduction <add>, %207, %cst_85 [0] : vector<1x256xf32> to vector<256xf32>
    %223 = vector.shape_cast %222 : vector<256xf32> to vector<1x256xf32>
    %cst_86 = arith.constant dense<0.000000e+00> : vector<256xf32>
    %224 = vector.multi_reduction <add>, %210, %cst_86 [0] : vector<1x256xf32> to vector<256xf32>
    %225 = vector.shape_cast %224 : vector<256xf32> to vector<1x256xf32>
    %226 = arith.mulf %204, %204 : vector<1x256xf32>
    %cst_87 = arith.constant dense<0.000000e+00> : vector<256xf32>
    %227 = vector.multi_reduction <add>, %226, %cst_87 [0] : vector<1x256xf32> to vector<256xf32>
    %228 = vector.shape_cast %227 : vector<256xf32> to vector<1x256xf32>
    %229 = arith.mulf %207, %207 : vector<1x256xf32>
    %cst_88 = arith.constant dense<0.000000e+00> : vector<256xf32>
    %230 = vector.multi_reduction <add>, %229, %cst_88 [0] : vector<1x256xf32> to vector<256xf32>
    %231 = vector.shape_cast %230 : vector<256xf32> to vector<1x256xf32>
    %232 = arith.mulf %210, %210 : vector<1x256xf32>
    %cst_89 = arith.constant dense<0.000000e+00> : vector<256xf32>
    %233 = vector.multi_reduction <add>, %232, %cst_89 [0] : vector<1x256xf32> to vector<256xf32>
    %234 = vector.shape_cast %233 : vector<256xf32> to vector<1x256xf32>
    %235 = tpu.concatenate %221, %223, %225, %228, %231, %234 in 0 : vector<1x256xf32>, vector<1x256xf32>, vector<1x256xf32>, vector<1x256xf32>, vector<1x256xf32>, vector<1x256xf32> -> vector<6x256xf32>
    %c0_90 = arith.constant 0 : index
    %c0_91 = arith.constant 0 : index
    %c0_92 = arith.constant 0 : index
    %236 = vector.load %arg4[%c0_90, %c0_91, %c0_92] : memref<1x6x256xf32, #tpu.memory_space<vmem>>, vector<1x6x256xf32>
    %237 = vector.shape_cast %236 : vector<1x6x256xf32> to vector<6x256xf32>
    %238 = arith.addf %237, %235 : vector<6x256xf32>
    %c0_93 = arith.constant 0 : index
    %c0_94 = arith.constant 0 : index
    %c0_95 = arith.constant 0 : index
    %239 = vector.load %arg4[%c0_93, %c0_94, %c0_95] : memref<1x6x256xf32, #tpu.memory_space<vmem>>, vector<1x6x256xf32>
    %240 = vector.shape_cast %239 : vector<1x6x256xf32> to vector<6x256xf32>
    %241 = vector.shape_cast %238 : vector<6x256xf32> to vector<1x6x256xf32>
    tpu.vector_store %arg4[%c0_93, %c0_94, %c0_95], %241 {strides = array<i32>} : memref<1x6x256xf32, #tpu.memory_space<vmem>>, vector<1x6x256xf32>,
    return
  }
  func.func @transform_0(%arg0: i32, %arg1: i32) -> (i32, i32, i32, i32) {
    %c0_i32 = arith.constant 0 : i32
    %c0_i32_0 = arith.constant 0 : i32
    %c0_i32_1 = arith.constant 0 : i32
    return %arg0, %c0_i32, %arg1, %c0_i32_0 : i32, i32, i32, i32
  }
  func.func @transform_1(%arg0: i32, %arg1: i32) -> (i32, i32, i32, i32) {
    %c0_i32 = arith.constant 0 : i32
    %c0_i32_0 = arith.constant 0 : i32
    %c0_i32_1 = arith.constant 0 : i32
    return %arg0, %c0_i32, %arg1, %c0_i32_0 : i32, i32, i32, i32
  }
  func.func @transform_2(%arg0: i32, %arg1: i32) -> (i32, i32, i32) {
    %c0_i32 = arith.constant 0 : i32
    %c0_i32_0 = arith.constant 0 : i32
    %c0_i32_1 = arith.constant 0 : i32
    return %arg0, %c0_i32, %c0_i32_0 : i32, i32, i32
  }
}

</mosaic_0001>

<llo_original>
// kernel: tpu_custom_call.1
$region0: #{tpu_custom_call.1}
  #allocation0 [shape = 'u32[]', space=smem, size = 0x4, offset = 0x4, fixed_abs, tag = 'smem constant byte address 0x4 - core index']
  #allocation1 [shape = 'u32[144,128]{1,0:T(1,128)}', space=vmem, size = 0x12000, scoped, tag = 'internal scratch']
  %s0 = inlined_call_operand.hbm [shape: f32[2,3,1,256], index: 0, kind: input, shape index: {}]
  %s1 = inlined_call_operand.hbm [shape: f32[2,3,1,256], index: 1, kind: output, shape index: {0}]
  %s2 = inlined_call_operand.vmem [shape: f32[2,6,256], index: 2, kind: output, shape index: {1}]
  %3 = xla_tuple %s1, %s2
  %s4 = sld [smem:[#allocation0]]
  $region53: #{tpu_custom_call.1} parent=0
    _
  %s6 = ssub.s32 1, %s4
  %s7 = scalar_select 0, %s6, %s4
  $region1: #{tpu_custom_call.1} parent=0
    #allocation2 [shape = 'u8[6144]{0}', space=vmem, size = 0x1800, scoped, tag = 'input window, operand 0']
    #allocation3 [shape = 's32[2]{0}', space=sflag, size = 0x8, scoped, tag = 'scoped memory for tpu_custom_call.1']
    #allocation4 [shape = 's32[2]{0}', space=sflag, size = 0x8, scoped, tag = 'scoped memory for tpu_custom_call.1']
    #allocation5 [shape = 'u8[6144]{0}', space=vmem, size = 0x1800, scoped, tag = 'output window, operand 0']
    %8 = vsyncpa [#allocation3], 0
    %s9 = scalar_lea.sflag [#allocation3], 1
    %10 = vsyncpa %s9, 0
    %11 = vsyncpa [#allocation4], 0
    %s12 = scalar_lea.sflag [#allocation4], 1
    %13 = vsyncpa %s12, 0
    loop: start=0, step=1, limit=4
    $region2: #{tpu_custom_call.1} parent=1 // loop_pre_header
      _
    $region3: #{tpu_custom_call.1} parent=1 // loop_header
      %s15 = sphi 0, %s19
      %p16 = scmp.ge.s32.totalorder %s15, 4
      %s22 = sphi 0, %s34
      %s23 = sphi 0, %s30
      %s24 = sphi 0, %s22
      %s25 = sphi 0, %s23
      %s26 = sphi 0, %s24
      %s27 = sphi 0, %s25
      %s39 = sphi 0, %s41
      %s42 = sphi 0, %s39
      %s43 = sphi 0, %s42
      %s59 = sphi 0, %s43
      %s67 = sphi 0, %s69
      %s70 = sphi 0, %s67
      %s71 = sphi 0, %s70
      %s87 = sphi 0, %s71
      %s93 = sphi 0, %s95
      %s96 = sphi 0, %s93
      %s97 = sphi 0, %s96
      %s113 = sphi 0, %s97
    $region4: #{tpu_custom_call.1} parent=1 // loop_header_branch
      %18 = sbr.rel (%p16) target = $region8
    $region5: #{tpu_custom_call.1} parent=1 // loop_body
      %s20 = ssub.s32 %s15, 1
      %s21 = ssub.s32 %s15, 2
      %s28 = sadd.s32 1, %s23
      %p29 = scmp.ge.s32.totalorder %s28, 1
      %s30 = scalar_select %p29, 0, %s28
      %s31 = sadd.s32 1, %s22
      %s32 = scalar_select %p29, %s31, %s22
      %p33 = scmp.ge.s32.totalorder %s32, 2
      %s34 = scalar_select %p33, 0, %s32
      %s35 = ssub.s32 %s22, %s34
      %s36 = ssub.s32 %s23, %s30
      %s37 = sor.u32 %s35, %s36
      %p38 = scmp.eq.s32.totalorder %s37, 0
      %s40 = sadd.s32 %s39, 1
      %s41 = scalar_select %p38, %s39, %s40
      %p44 = pneg %p38
      %p45 = scmp.eq.s32.totalorder %s15, 1
      %p46 = por %p44, %p45
      %p47 = scmp.ne.s32.totalorder %s39, %s42
      %p48 = scmp.eq.s32.totalorder %s15, 0
      %p49 = por %p47, %p48
      %p50 = scmp.ne.s32.totalorder %s39, %s42
      %p51 = scmp.eq.s32.totalorder %s20, 1
      %p52 = por %p50, %p51
      %p53 = scmp.ne.s32.totalorder %s42, %s43
      %p54 = scmp.eq.s32.totalorder %s20, 0
      %p55 = por %p53, %p54
      %p56 = scmp.ne.s32.totalorder %s42, %s43
      %p57 = scmp.eq.s32.totalorder %s21, 1
      %p58 = por %p56, %p57
      %p60 = scmp.ne.s32.totalorder %s43, %s59
      %p61 = scmp.eq.s32.totalorder %s21, 0
      %p62 = por %p60, %p61
      %s63 = ssub.s32 %s22, %s34
      %s64 = ssub.s32 %s23, %s30
      %s65 = sor.u32 %s63, %s64
      %p66 = scmp.eq.s32.totalorder %s65, 0
      %s68 = sadd.s32 %s67, 1
      %s69 = scalar_select %p66, %s67, %s68
      %p72 = pneg %p66
      %p73 = scmp.eq.s32.totalorder %s15, 1
      %p74 = por %p72, %p73
      %p75 = scmp.ne.s32.totalorder %s67, %s70
      %p76 = scmp.eq.s32.totalorder %s15, 0
      %p77 = por %p75, %p76
      %p78 = scmp.ne.s32.totalorder %s67, %s70
      %p79 = scmp.eq.s32.totalorder %s20, 1
      %p80 = por %p78, %p79
      %p81 = scmp.ne.s32.totalorder %s70, %s71
      %p82 = scmp.eq.s32.totalorder %s20, 0
      %p83 = por %p81, %p82
      %p84 = scmp.ne.s32.totalorder %s70, %s71
      %p85 = scmp.eq.s32.totalorder %s21, 1
      %p86 = por %p84, %p85
      %p88 = scmp.ne.s32.totalorder %s71, %s87
      %p89 = scmp.eq.s32.totalorder %s21, 0
      %p90 = por %p88, %p89
      %s91 = ssub.s32 %s22, %s34
      %p92 = scmp.eq.s32.totalorder %s91, 0
      %s94 = sadd.s32 %s93, 1
      %s95 = scalar_select %p92, %s93, %s94
      %p98 = pneg %p92
      %p99 = scmp.eq.s32.totalorder %s15, 1
      %p100 = por %p98, %p99
      %p101 = scmp.ne.s32.totalorder %s93, %s96
      %p102 = scmp.eq.s32.totalorder %s15, 0
      %p103 = por %p101, %p102
      %p104 = scmp.ne.s32.totalorder %s93, %s96
      %p105 = scmp.eq.s32.totalorder %s20, 1
      %p106 = por %p104, %p105
      %p107 = scmp.ne.s32.totalorder %s96, %s97
      %p108 = scmp.eq.s32.totalorder %s20, 0
      %p109 = por %p107, %p108
      %p110 = scmp.ne.s32.totalorder %s96, %s97
      %p111 = scmp.eq.s32.totalorder %s21, 1
      %p112 = por %p110, %p111
      %p114 = scmp.ne.s32.totalorder %s97, %s113
      %p115 = scmp.eq.s32.totalorder %s21, 0
      %p116 = por %p114, %p115
      %p117 = scmp.le.s32.totalorder 1, %s15
      %p118 = scmp.lt.s32.totalorder %s15, 3
      %p119 = pnand %p117, %p118
      %p120 = pneg %p119
      // Predicated region
      $region9: #{tpu_custom_call.1} parent=5 // pred_check
        _
      $region10: #{tpu_custom_call.1} parent=5 // pred_check_branch
        %122 = sbr.rel (%p119) target = $region12
      $region11: #{tpu_custom_call.1} parent=5 // pred_region
        %s123 = ssub.s32 %s15, 1
      $region12: #{tpu_custom_call.1} parent=5 // pred_fallthru
        _
      %p124 = scmp.lt.s32.totalorder %s15, 2
      // Predicated region
      $region13: #{tpu_custom_call.1} parent=5 // pred_check
        %p125 = pneg %p124
      $region14: #{tpu_custom_call.1} parent=5 // pred_check_branch
        %127 = sbr.rel (%p125) target = $region16
      $region15: #{tpu_custom_call.1} parent=5 // pred_region
        // Predicated region
        $region17: #{tpu_custom_call.1} parent=15 // pred_check
          %p128 = pneg %p49
        $region18: #{tpu_custom_call.1} parent=15 // pred_check_branch
          %130 = sbr.rel (%p128) target = $region20
        $region19: #{tpu_custom_call.1} parent=15 // pred_region
          %s131 = sand.u32 %s39, 1
          %s132 = scalar_lea.sflag [#allocation3], %s131
          %s133 = sand.u32 %s39, 1
          %s134 = smul.addr %s133, 6
          %s135 = scalar_lea.vmem [#allocation2], %s134
          %s137 = ssub.s32 96, 96
          %138 = vsyncadd %s132, %s137
          %s139 = smul.addr %s23, 2
          %s140 = smul.addr %s22, 6
          %s141 = sadd.s32 %s139, %s140
          %s142 = smul.addr %s141, 16
          %s143 = scalar_lea.hbm %s0, %s142
          %s144 = sshll.u32 %s135, 4
          %s145 = int_to_ptr.vmem [resolvable:$true] %s144
          %150 = dma.hbm_to_vmem [thread:$0]  %s143, 96, %s145, %s132, 32, 32, 2
        $region20: #{tpu_custom_call.1} parent=15 // pred_fallthru
          _
      $region16: #{tpu_custom_call.1} parent=5 // pred_fallthru
        _
      %p151 = scmp.le.s32.totalorder 1, %s15
      %p152 = scmp.lt.s32.totalorder %s15, 3
      %p153 = pnand %p151, %p152
      %p154 = pneg %p153
      // Predicated region
      $region21: #{tpu_custom_call.1} parent=5 // pred_check
        _
      $region22: #{tpu_custom_call.1} parent=5 // pred_check_branch
        %156 = sbr.rel (%p153) target = $region24
      $region23: #{tpu_custom_call.1} parent=5 // pred_region
        %s157 = ssub.s32 %s15, 1
        %s158 = sand.u32 %s42, 1
        %s159 = scalar_lea.sflag [#allocation3], %s158
        %s160 = sand.u32 %s42, 1
        %s161 = smul.addr %s160, 6
        %s162 = scalar_lea.vmem [#allocation2], %s161
        // Predicated region
        $region25: #{tpu_custom_call.1} parent=23 // pred_check
          %p163 = pneg %p55
        $region26: #{tpu_custom_call.1} parent=23 // pred_check_branch
          %165 = sbr.rel (%p163) target = $region28
        $region27: #{tpu_custom_call.1} parent=23 // pred_region
          %166 = dma.done %s159, 96
        $region28: #{tpu_custom_call.1} parent=23 // pred_fallthru
          _
        %s167 = sand.u32 %s42, 1
        %s168 = scalar_lea.sflag [#allocation3], %s167
        %s169 = sand.u32 %s42, 1
        %s170 = smul.addr %s169, 6
        %s171 = scalar_lea.vmem [#allocation2], %s170
        %p172 = pneg %p55
        %p173 = pneg %p52
        %p174 = pneg %p83
        %p175 = pneg %p80
        %s176 = sand.u32 %s70, 1
        %s177 = scalar_lea.sflag [#allocation4], %s176
        %s178 = sand.u32 %s70, 1
        %s179 = smul.addr %s178, 6
        %s180 = scalar_lea.vmem [#allocation5], %s179
        %p181 = pneg %p109
        %p182 = pneg %p106
        %p183 = scmp.lt.s32.totalorder %s24, 1
        %s184 = scalar_select %p183, %s24, 1
        %s185 = smul.addr %s184, 2
        %s186 = smul.addr %s185, 8
        %s187 = scalar_lea.vmem %s2, %s186
        %p188 = scmp.lt.s32.totalorder %s24, 1
        %s189 = scalar_select %p188, %s24, 1
        %s190 = smul.addr %s189, 2
        %s191 = smul.addr %s190, 8
        %s192 = scalar_lea.vmem %s2, %s191
        %p193 = scmp.eq.s32.totalorder %s25, 0
        // Predicated region
        $region29: #{tpu_custom_call.1} parent=23 // pred_check
          %p194 = pneg %p193
        $region30: #{tpu_custom_call.1} parent=23 // pred_check_branch
          %196 = sbr.rel (%p194) target = $region32
        $region31: #{tpu_custom_call.1} parent=23 // pred_region
          %197 = vst [vmem:[%s192] sm:$0x3f] 0.0
          %198 = vst [vmem:[%s192 + $0x8] sm:$0x3f] 0.0
        $region32: #{tpu_custom_call.1} parent=23 // pred_fallthru
          _
        %v199 = vld [vmem:[%s162] sm:$0x3]
        %s200 = scalar_lea.vmem %s162, 2 [#allocation2]
        %v201 = vld [vmem:[%s200] sm:$0x3]
        %s202 = scalar_lea.vmem %s162, 4 [#allocation2]
        %v203 = vld [vmem:[%s202] sm:$0x3]
        %vm204 = vcmp.gt.f32.partialorder %v199, 0.04045
        %v205 = vadd.f32 %v199, 0.055
        %v206 = vmul.f32 %v205, 0.9478673
        %v207 = vmax.f32 %v206, 1e-12
        %v208 = vlog2.pop %v207
        %v209 = vmul.f32 %v208, 0.6931472
        %v210 = vmul.f32 %v209, 2.4
        %v211 = vmul.f32 %v210, 1.442695
        %v212 = vpow.pop %v211
        %v213 = vmul.f32 %v199, 0.07739938
        %v214 = vsel %vm204, %v212, %v213
        %vm215 = vcmp.gt.f32.partialorder %v201, 0.04045
        %v216 = vadd.f32 %v201, 0.055
        %v217 = vmul.f32 %v216, 0.9478673
        %v218 = vmax.f32 %v217, 1e-12
        %v219 = vlog2.pop %v218
        %v220 = vmul.f32 %v219, 0.6931472
        %v221 = vmul.f32 %v220, 2.4
        %v222 = vmul.f32 %v221, 1.442695
        %v223 = vpow.pop %v222
        %v224 = vmul.f32 %v201, 0.07739938
        %v225 = vsel %vm215, %v223, %v224
        %vm226 = vcmp.gt.f32.partialorder %v203, 0.04045
        %v227 = vadd.f32 %v203, 0.055
        %v228 = vmul.f32 %v227, 0.9478673
        %v229 = vmax.f32 %v228, 1e-12
        %v230 = vlog2.pop %v229
        %v231 = vmul.f32 %v230, 0.6931472
        %v232 = vmul.f32 %v231, 2.4
        %v233 = vmul.f32 %v232, 1.442695
        %v234 = vpow.pop %v233
        %v235 = vmul.f32 %v203, 0.07739938
        %v236 = vsel %vm226, %v234, %v235
        %v237 = vmul.f32 %v214, 0.412453
        %v238 = vmul.f32 %v225, 0.35758
        %v239 = vadd.f32 %v237, %v238
        %v240 = vmul.f32 %v236, 0.180423
        %v241 = vadd.f32 %v239, %v240
        %v242 = vmul.f32 %v214, 0.212671
        %v243 = vmul.f32 %v225, 0.71516
        %v244 = vadd.f32 %v242, %v243
        %v245 = vmul.f32 %v236, 0.072169
        %v246 = vadd.f32 %v244, %v245
        %v247 = vmul.f32 %v214, 0.019334
        %v248 = vmul.f32 %v225, 0.119193
        %v249 = vadd.f32 %v247, %v248
        %v250 = vmul.f32 %v236, 0.950227
        %v251 = vadd.f32 %v249, %v250
        %v252 = vmul.f32 %v241, 1.052111
        %vm253 = vcmp.gt.f32.partialorder %v252, 0.008856
        %v254 = vmax.f32 %v252, 1e-12
        %v256 = vlaneseq
        %v257 = vshrl.u32 %v256, 7
        %v258 = vsub.s32 0, %v257
        %v259 = vrot.slane %v254, %v258
        %v260 = vlaneseq
        %v261 = vshrl.u32 %v260, 7
        %v262 = vsub.s32 1, %v261
        %v263 = vrot.slane %v254, %v262
        %v264 = vcvt.s32.f32 %v259
        %v265 = vcvt.s32.f32 %v263
        %v266 = vmul.f32 %v264, 0.33333334
        %v267 = vmul.f32 %v265, 0.33333334
        %v268 = vcvt.f32.s32.to.zero.pseudo %v266
        %v269 = vcvt.f32.s32.to.zero.pseudo %v267
        %v270 = vsub.s32 1419967614, %v268
        %v271 = vsub.s32 1419967614, %v269
        %v274 = vmul.f32 %v254, 0.33333334
        %v275 = vmul.f32 %v270, %v270
        %v276 = vmul.f32 %v271, %v271
        %v277 = vmul.f32 %v275, %v270
        %v278 = vmul.f32 %v276, %v271
        %v281 = vcombine.low %v277, %v278
        %v283 = vunpack.c.l.s4 1966171168
        %v284 = vunpack.c.0.s8 %v283
        %v285 = vlaneseq
        %v286 = vshrl.u32 %v285, 7
        %v287 = vsub.s32 %v284, %v286
        %v288 = vrot.slane %v281, %v287
        %v290 = vunpack.c.l.s4 1966171168
        %v291 = vunpack.c.0.s8 %v290
        %v292 = vlaneseq
        %v293 = vshrl.u32 %v292, 7
        %v294 = vsub.s32 %v291, %v293
        %v295 = vrot.slane %v288, %v294
        %v297 = vmul.f32 %v274, %v295
        %v298 = vsub.f32 1.3333334, %v297
        %v300 = vlaneseq
        %v301 = vshrl.u32 %v300, 7
        %v302 = vsub.s32 0, %v301
        %v303 = vrot.slane %v298, %v302
        %v304 = vlaneseq
        %v305 = vshrl.u32 %v304, 7
        %v306 = vsub.s32 1, %v305
        %v307 = vrot.slane %v298, %v306
        %v310 = vmul.f32 %v270, %v303
        %v311 = vmul.f32 %v271, %v307
        %v312 = vmul.f32 %v310, %v310
        %v313 = vmul.f32 %v311, %v311
        %v314 = vmul.f32 %v312, %v310
        %v315 = vmul.f32 %v313, %v311
        %v318 = vcombine.low %v314, %v315
        %v320 = vunpack.c.l.s4 1966171168
        %v321 = vunpack.c.0.s8 %v320
        %v322 = vlaneseq
        %v323 = vshrl.u32 %v322, 7
        %v324 = vsub.s32 %v321, %v323
        %v325 = vrot.slane %v318, %v324
        %v327 = vunpack.c.l.s4 1966171168
        %v328 = vunpack.c.0.s8 %v327
        %v329 = vlaneseq
        %v330 = vshrl.u32 %v329, 7
        %v331 = vsub.s32 %v328, %v330
        %v332 = vrot.slane %v325, %v331
        %v334 = vmul.f32 %v274, %v332
        %v335 = vsub.f32 1.3333334, %v334
        %v337 = vlaneseq
        %v338 = vshrl.u32 %v337, 7
        %v339 = vsub.s32 0, %v338
        %v340 = vrot.slane %v335, %v339
        %v341 = vlaneseq
        %v342 = vshrl.u32 %v341, 7
        %v343 = vsub.s32 1, %v342
        %v344 = vrot.slane %v335, %v343
        %v347 = vmul.f32 %v310, %v340
        %v348 = vmul.f32 %v311, %v344
        %v349 = vmul.f32 %v347, %v347
        %v350 = vmul.f32 %v348, %v348
        %v351 = vmul.f32 %v349, %v347
        %v352 = vmul.f32 %v350, %v348
        %v355 = vcombine.low %v351, %v352
        %v357 = vunpack.c.l.s4 1966171168
        %v358 = vunpack.c.0.s8 %v357
        %v359 = vlaneseq
        %v360 = vshrl.u32 %v359, 7
        %v361 = vsub.s32 %v358, %v360
        %v362 = vrot.slane %v355, %v361
        %v364 = vunpack.c.l.s4 1966171168
        %v365 = vunpack.c.0.s8 %v364
        %v366 = vlaneseq
        %v367 = vshrl.u32 %v366, 7
        %v368 = vsub.s32 %v365, %v367
        %v369 = vrot.slane %v362, %v368
        %v371 = vmul.f32 %v274, %v369
        %v372 = vsub.f32 1.3333334, %v371
        %v374 = vlaneseq
        %v375 = vshrl.u32 %v374, 7
        %v376 = vsub.s32 0, %v375
        %v377 = vrot.slane %v372, %v376
        %v378 = vlaneseq
        %v379 = vshrl.u32 %v378, 7
        %v380 = vsub.s32 1, %v379
        %v381 = vrot.slane %v372, %v380
        %v384 = vmul.f32 %v347, %v377
        %v385 = vmul.f32 %v348, %v381
        %v386 = vmul.f32 %v384, %v384
        %v387 = vmul.f32 %v385, %v385
        %v390 = vcombine.low %v386, %v387
        %v392 = vunpack.c.l.s4 1966171168
        %v393 = vunpack.c.0.s8 %v392
        %v394 = vlaneseq
        %v395 = vshrl.u32 %v394, 7
        %v396 = vsub.s32 %v393, %v395
        %v397 = vrot.slane %v390, %v396
        %v399 = vunpack.c.l.s4 1966171168
        %v400 = vunpack.c.0.s8 %v399
        %v401 = vlaneseq
        %v402 = vshrl.u32 %v401, 7
        %v403 = vsub.s32 %v400, %v402
        %v404 = vrot.slane %v397, %v403
        %v406 = vmul.f32 %v254, %v404
        %v407 = vmul.f32 %v252, 7.787
        %v408 = vadd.f32 %v407, 0.13793103
        %v409 = vsel %vm253, %v406, %v408
        %vm410 = vcmp.gt.f32.partialorder %v246, 0.008856
        %v411 = vmax.f32 %v246, 1e-12
        %v413 = vlaneseq
        %v414 = vshrl.u32 %v413, 7
        %v415 = vsub.s32 0, %v414
        %v416 = vrot.slane %v411, %v415
        %v417 = vlaneseq
        %v418 = vshrl.u32 %v417, 7
        %v419 = vsub.s32 1, %v418
        %v420 = vrot.slane %v411, %v419
        %v421 = vcvt.s32.f32 %v416
        %v422 = vcvt.s32.f32 %v420
        %v423 = vmul.f32 %v421, 0.33333334
        %v424 = vmul.f32 %v422, 0.33333334
        %v425 = vcvt.f32.s32.to.zero.pseudo %v423
        %v426 = vcvt.f32.s32.to.zero.pseudo %v424
        %v427 = vsub.s32 1419967614, %v425
        %v428 = vsub.s32 1419967614, %v426
        %v431 = vmul.f32 %v411, 0.33333334
        %v432 = vmul.f32 %v427, %v427
        %v433 = vmul.f32 %v428, %v428
        %v434 = vmul.f32 %v432, %v427
        %v435 = vmul.f32 %v433, %v428
        %v438 = vcombine.low %v434, %v435
        %v440 = vunpack.c.l.s4 1966171168
        %v441 = vunpack.c.0.s8 %v440
        %v442 = vlaneseq
        %v443 = vshrl.u32 %v442, 7
        %v444 = vsub.s32 %v441, %v443
        %v445 = vrot.slane %v438, %v444
        %v447 = vunpack.c.l.s4 1966171168
        %v448 = vunpack.c.0.s8 %v447
        %v449 = vlaneseq
        %v450 = vshrl.u32 %v449, 7
        %v451 = vsub.s32 %v448, %v450
        %v452 = vrot.slane %v445, %v451
        %v454 = vmul.f32 %v431, %v452
        %v455 = vsub.f32 1.3333334, %v454
        %v457 = vlaneseq
        %v458 = vshrl.u32 %v457, 7
        %v459 = vsub.s32 0, %v458
        %v460 = vrot.slane %v455, %v459
        %v461 = vlaneseq
        %v462 = vshrl.u32 %v461, 7
        %v463 = vsub.s32 1, %v462
        %v464 = vrot.slane %v455, %v463
        %v467 = vmul.f32 %v427, %v460
        %v468 = vmul.f32 %v428, %v464
        %v469 = vmul.f32 %v467, %v467
        %v470 = vmul.f32 %v468, %v468
        %v471 = vmul.f32 %v469, %v467
        %v472 = vmul.f32 %v470, %v468
        %v475 = vcombine.low %v471, %v472
        %v477 = vunpack.c.l.s4 1966171168
        %v478 = vunpack.c.0.s8 %v477
        %v479 = vlaneseq
        %v480 = vshrl.u32 %v479, 7
        %v481 = vsub.s32 %v478, %v480
        %v482 = vrot.slane %v475, %v481
        %v484 = vunpack.c.l.s4 1966171168
        %v485 = vunpack.c.0.s8 %v484
        %v486 = vlaneseq
        %v487 = vshrl.u32 %v486, 7
        %v488 = vsub.s32 %v485, %v487
        %v489 = vrot.slane %v482, %v488
        %v491 = vmul.f32 %v431, %v489
        %v492 = vsub.f32 1.3333334, %v491
        %v494 = vlaneseq
        %v495 = vshrl.u32 %v494, 7
        %v496 = vsub.s32 0, %v495
        %v497 = vrot.slane %v492, %v496
        %v498 = vlaneseq
        %v499 = vshrl.u32 %v498, 7
        %v500 = vsub.s32 1, %v499
        %v501 = vrot.slane %v492, %v500
        %v504 = vmul.f32 %v467, %v497
        %v505 = vmul.f32 %v468, %v501
        %v506 = vmul.f32 %v504, %v504
        %v507 = vmul.f32 %v505, %v505
        %v508 = vmul.f32 %v506, %v504
        %v509 = vmul.f32 %v507, %v505
        %v512 = vcombine.low %v508, %v509
        %v514 = vunpack.c.l.s4 1966171168
        %v515 = vunpack.c.0.s8 %v514
        %v516 = vlaneseq
        %v517 = vshrl.u32 %v516, 7
        %v518 = vsub.s32 %v515, %v517
        %v519 = vrot.slane %v512, %v518
        %v521 = vunpack.c.l.s4 1966171168
        %v522 = vunpack.c.0.s8 %v521
        %v523 = vlaneseq
        %v524 = vshrl.u32 %v523, 7
        %v525 = vsub.s32 %v522, %v524
        %v526 = vrot.slane %v519, %v525
        %v528 = vmul.f32 %v431, %v526
        %v529 = vsub.f32 1.3333334, %v528
        %v531 = vlaneseq
        %v532 = vshrl.u32 %v531, 7
        %v533 = vsub.s32 0, %v532
        %v534 = vrot.slane %v529, %v533
        %v535 = vlaneseq
        %v536 = vshrl.u32 %v535, 7
        %v537 = vsub.s32 1, %v536
        %v538 = vrot.slane %v529, %v537
        %v541 = vmul.f32 %v504, %v534
        %v542 = vmul.f32 %v505, %v538
        %v543 = vmul.f32 %v541, %v541
        %v544 = vmul.f32 %v542, %v542
        %v547 = vcombine.low %v543, %v544
        %v549 = vunpack.c.l.s4 1966171168
        %v550 = vunpack.c.0.s8 %v549
        %v551 = vlaneseq
        %v552 = vshrl.u32 %v551, 7
        %v553 = vsub.s32 %v550, %v552
        %v554 = vrot.slane %v547, %v553
        %v556 = vunpack.c.l.s4 1966171168
        %v557 = vunpack.c.0.s8 %v556
        %v558 = vlaneseq
        %v559 = vshrl.u32 %v558, 7
        %v560 = vsub.s32 %v557, %v559
        %v561 = vrot.slane %v554, %v560
        %v563 = vmul.f32 %v411, %v561
        %v564 = vmul.f32 %v246, 7.787
        %v565 = vadd.f32 %v564, 0.13793103
        %v566 = vsel %vm410, %v563, %v565
        %v567 = vmul.f32 %v251, 0.91841704
        %vm568 = vcmp.gt.f32.partialorder %v567, 0.008856
        %v569 = vmax.f32 %v567, 1e-12
        %v571 = vlaneseq
        %v572 = vshrl.u32 %v571, 7
        %v573 = vsub.s32 0, %v572
        %v574 = vrot.slane %v569, %v573
        %v575 = vlaneseq
        %v576 = vshrl.u32 %v575, 7
        %v577 = vsub.s32 1, %v576
        %v578 = vrot.slane %v569, %v577
        %v579 = vcvt.s32.f32 %v574
        %v580 = vcvt.s32.f32 %v578
        %v581 = vmul.f32 %v579, 0.33333334
        %v582 = vmul.f32 %v580, 0.33333334
        %v583 = vcvt.f32.s32.to.zero.pseudo %v581
        %v584 = vcvt.f32.s32.to.zero.pseudo %v582
        %v585 = vsub.s32 1419967614, %v583
        %v586 = vsub.s32 1419967614, %v584
        %v589 = vmul.f32 %v569, 0.33333334
        %v590 = vmul.f32 %v585, %v585
        %v591 = vmul.f32 %v586, %v586
        %v592 = vmul.f32 %v590, %v585
        %v593 = vmul.f32 %v591, %v586
        %v596 = vcombine.low %v592, %v593
        %v598 = vunpack.c.l.s4 1966171168
        %v599 = vunpack.c.0.s8 %v598
        %v600 = vlaneseq
        %v601 = vshrl.u32 %v600, 7
        %v602 = vsub.s32 %v599, %v601
        %v603 = vrot.slane %v596, %v602
        %v605 = vunpack.c.l.s4 1966171168
        %v606 = vunpack.c.0.s8 %v605
        %v607 = vlaneseq
        %v608 = vshrl.u32 %v607, 7
        %v609 = vsub.s32 %v606, %v608
        %v610 = vrot.slane %v603, %v609
        %v612 = vmul.f32 %v589, %v610
        %v613 = vsub.f32 1.3333334, %v612
        %v615 = vlaneseq
        %v616 = vshrl.u32 %v615, 7
        %v617 = vsub.s32 0, %v616
        %v618 = vrot.slane %v613, %v617
        %v619 = vlaneseq
        %v620 = vshrl.u32 %v619, 7
        %v621 = vsub.s32 1, %v620
        %v622 = vrot.slane %v613, %v621
        %v625 = vmul.f32 %v585, %v618
        %v626 = vmul.f32 %v586, %v622
        %v627 = vmul.f32 %v625, %v625
        %v628 = vmul.f32 %v626, %v626
        %v629 = vmul.f32 %v627, %v625
        %v630 = vmul.f32 %v628, %v626
        %v633 = vcombine.low %v629, %v630
        %v635 = vunpack.c.l.s4 1966171168
        %v636 = vunpack.c.0.s8 %v635
        %v637 = vlaneseq
        %v638 = vshrl.u32 %v637, 7
        %v639 = vsub.s32 %v636, %v638
        %v640 = vrot.slane %v633, %v639
        %v642 = vunpack.c.l.s4 1966171168
        %v643 = vunpack.c.0.s8 %v642
        %v644 = vlaneseq
        %v645 = vshrl.u32 %v644, 7
        %v646 = vsub.s32 %v643, %v645
        %v647 = vrot.slane %v640, %v646
        %v649 = vmul.f32 %v589, %v647
        %v650 = vsub.f32 1.3333334, %v649
        %v652 = vlaneseq
        %v653 = vshrl.u32 %v652, 7
        %v654 = vsub.s32 0, %v653
        %v655 = vrot.slane %v650, %v654
        %v656 = vlaneseq
        %v657 = vshrl.u32 %v656, 7
        %v658 = vsub.s32 1, %v657
        %v659 = vrot.slane %v650, %v658
        %v662 = vmul.f32 %v625, %v655
        %v663 = vmul.f32 %v626, %v659
        %v664 = vmul.f32 %v662, %v662
        %v665 = vmul.f32 %v663, %v663
        %v666 = vmul.f32 %v664, %v662
        %v667 = vmul.f32 %v665, %v663
        %v670 = vcombine.low %v666, %v667
        %v672 = vunpack.c.l.s4 1966171168
        %v673 = vunpack.c.0.s8 %v672
        %v674 = vlaneseq
        %v675 = vshrl.u32 %v674, 7
        %v676 = vsub.s32 %v673, %v675
        %v677 = vrot.slane %v670, %v676
        %v679 = vunpack.c.l.s4 1966171168
        %v680 = vunpack.c.0.s8 %v679
        %v681 = vlaneseq
        %v682 = vshrl.u32 %v681, 7
        %v683 = vsub.s32 %v680, %v682
        %v684 = vrot.slane %v677, %v683
        %v686 = vmul.f32 %v589, %v684
        %v687 = vsub.f32 1.3333334, %v686
        %v689 = vlaneseq
        %v690 = vshrl.u32 %v689, 7
        %v691 = vsub.s32 0, %v690
        %v692 = vrot.slane %v687, %v691
        %v693 = vlaneseq
        %v694 = vshrl.u32 %v693, 7
        %v695 = vsub.s32 1, %v694
        %v696 = vrot.slane %v687, %v695
        %v699 = vmul.f32 %v662, %v692
        %v700 = vmul.f32 %v663, %v696
        %v701 = vmul.f32 %v699, %v699
        %v702 = vmul.f32 %v700, %v700
        %v705 = vcombine.low %v701, %v702
        %v707 = vunpack.c.l.s4 1966171168
        %v708 = vunpack.c.0.s8 %v707
        %v709 = vlaneseq
        %v710 = vshrl.u32 %v709, 7
        %v711 = vsub.s32 %v708, %v710
        %v712 = vrot.slane %v705, %v711
        %v714 = vunpack.c.l.s4 1966171168
        %v715 = vunpack.c.0.s8 %v714
        %v716 = vlaneseq
        %v717 = vshrl.u32 %v716, 7
        %v718 = vsub.s32 %v715, %v717
        %v719 = vrot.slane %v712, %v718
        %v721 = vmul.f32 %v569, %v719
        %v722 = vmul.f32 %v567, 7.787
        %v723 = vadd.f32 %v722, 0.13793103
        %v724 = vsel %vm568, %v721, %v723
        %v725 = vmul.f32 %v566, 116.0
        %v726 = vsub.f32 %v725, 66.0
        %v727 = vsub.f32 %v409, %v566
        %v728 = vmul.f32 %v727, 500.0
        %v729 = vsub.f32 %v566, %v724
        %v730 = vmul.f32 %v729, 200.0
        %v731 = vlaneseq
        %vm732 = vcmp.ge.s32.totalorder %v731, 0
        %vm733 = vcmp.lt.s32.totalorder %v731, 256
        %vm734 = vmand %vm732, %vm733
        %735 = vst.msk [vmem:[%s180] sm:$0x3] %vm734, %v726
        %s736 = scalar_lea.vmem %s180, 2 [#allocation5]
        %737 = vst.msk [vmem:[%s736] sm:$0x3] %vm734, %v728
        %s738 = scalar_lea.vmem %s180, 4 [#allocation5]
        %739 = vst.msk [vmem:[%s738] sm:$0x3] %vm734, %v730
        %v740 = vadd.f32 %v726, 0.0
        %v741 = vadd.f32 %v728, 0.0
        %v742 = vadd.f32 %v730, 0.0
        %v743 = vmul.f32 %v726, %v726
        %v744 = vadd.f32 %v743, 0.0
        %v745 = vmul.f32 %v728, %v728
        %v746 = vadd.f32 %v745, 0.0
        %v747 = vmul.f32 %v730, %v730
        %v748 = vadd.f32 %v747, 0.0
        %v750 = vlaneseq
        %v751 = vshrl.u32 %v750, 7
        %v752 = vsub.s32 0, %v751
        %v753 = vrot.slane %v740, %v752
        %v754 = vlaneseq
        %v755 = vshrl.u32 %v754, 7
        %v756 = vsub.s32 1, %v755
        %v757 = vrot.slane %v740, %v756
        %v761 = vlaneseq
        %v762 = vshrl.u32 %v761, 7
        %v763 = vsub.s32 0, %v762
        %v764 = vrot.slane %v741, %v763
        %v765 = vlaneseq
        %v766 = vshrl.u32 %v765, 7
        %v767 = vsub.s32 1, %v766
        %v768 = vrot.slane %v741, %v767
        %v772 = vlaneseq
        %v773 = vshrl.u32 %v772, 7
        %v774 = vsub.s32 0, %v773
        %v775 = vrot.slane %v742, %v774
        %v776 = vlaneseq
        %v777 = vshrl.u32 %v776, 7
        %v778 = vsub.s32 1, %v777
        %v779 = vrot.slane %v742, %v778
        %v783 = vlaneseq
        %v784 = vshrl.u32 %v783, 7
        %v785 = vsub.s32 0, %v784
        %v786 = vrot.slane %v744, %v785
        %v787 = vlaneseq
        %v788 = vshrl.u32 %v787, 7
        %v789 = vsub.s32 1, %v788
        %v790 = vrot.slane %v744, %v789
        %v794 = vlaneseq
        %v795 = vshrl.u32 %v794, 7
        %v796 = vsub.s32 0, %v795
        %v797 = vrot.slane %v746, %v796
        %v798 = vlaneseq
        %v799 = vshrl.u32 %v798, 7
        %v800 = vsub.s32 1, %v799
        %v801 = vrot.slane %v746, %v800
        %v805 = vlaneseq
        %v806 = vshrl.u32 %v805, 7
        %v807 = vsub.s32 0, %v806
        %v808 = vrot.slane %v748, %v807
        %v809 = vlaneseq
        %v810 = vshrl.u32 %v809, 7
        %v811 = vsub.s32 1, %v810
        %v812 = vrot.slane %v748, %v811
        %vm815 = vcmask 1040384
        %v816 = vsel %vm815, %v753, %v764
        %v817 = vsel %vm815, %v757, %v768
        %vm818 = vcmask 1041408
        %v819 = vsel %vm818, %v816, %v775
        %v820 = vsel %vm818, %v817, %v779
        %vm821 = vcmask 1042432
        %v822 = vsel %vm821, %v819, %v786
        %v823 = vsel %vm821, %v820, %v790
        %vm824 = vcmask 1043456
        %v825 = vsel %vm824, %v822, %v797
        %v826 = vsel %vm824, %v823, %v801
        %vm827 = vcmask 1044480
        %v828 = vsel %vm827, %v825, %v808
        %v829 = vsel %vm827, %v826, %v812
        %v830 = vld [vmem:[%s192] sm:$0x3f]
        %v831 = vld [vmem:[%s192 + $0x8] sm:$0x3f]
        %v832 = vadd.f32 %v830, %v828
        %v833 = vadd.f32 %v831, %v829
        %834 = vst [vmem:[%s192] sm:$0x3f] %v832
        %835 = vst [vmem:[%s192 + $0x8] sm:$0x3f] %v833
        %s836 = sand.u32 %s70, 1
        %s837 = scalar_lea.sflag [#allocation4], %s836
        %s838 = sand.u32 %s70, 1
        %s839 = smul.addr %s838, 6
        %s840 = scalar_lea.vmem [#allocation5], %s839
        %p841 = scmp.lt.s32.totalorder %s24, 1
        %s842 = scalar_select %p841, %s24, 1
        %s843 = smul.addr %s842, 2
        %s844 = smul.addr %s843, 8
        %s845 = scalar_lea.vmem %s2, %s844
        // Predicated region
        $region33: #{tpu_custom_call.1} parent=23 // pred_check
          %p846 = pneg %p80
        $region34: #{tpu_custom_call.1} parent=23 // pred_check_branch
          %848 = sbr.rel (%p846) target = $region36
        $region35: #{tpu_custom_call.1} parent=23 // pred_region
          %s850 = ssub.s32 96, 96
          %851 = vsyncadd %s837, %s850
          %s852 = smul.addr %s25, 2
          %s853 = smul.addr %s24, 6
          %s854 = sadd.s32 %s852, %s853
          %s855 = smul.addr %s854, 16
          %s856 = scalar_lea.hbm %s1, %s855
          %s857 = sshll.u32 %s840, 4
          %s858 = int_to_ptr.vmem [resolvable:$true] %s857
          %863 = dma.vmem_to_hbm [thread:$0]  %s858, 96, %s856, %s837, 32, 32, 2
        $region36: #{tpu_custom_call.1} parent=23 // pred_fallthru
          _
        // Predicated region
        $region37: #{tpu_custom_call.1} parent=23 // pred_check
          %p864 = pneg %p106
        $region38: #{tpu_custom_call.1} parent=23 // pred_check_branch
          %866 = sbr.rel (%p864) target = $region40
        $region39: #{tpu_custom_call.1} parent=23 // pred_region
          _
        $region40: #{tpu_custom_call.1} parent=23 // pred_fallthru
          _
      $region24: #{tpu_custom_call.1} parent=5 // pred_fallthru
        _
      %p867 = scmp.le.s32.totalorder 2, %s15
      // Predicated region
      $region41: #{tpu_custom_call.1} parent=5 // pred_check
        %p868 = pneg %p867
      $region42: #{tpu_custom_call.1} parent=5 // pred_check_branch
        %870 = sbr.rel (%p868) target = $region44
      $region43: #{tpu_custom_call.1} parent=5 // pred_region
        %s871 = ssub.s32 %s15, 2
        // Predicated region
        $region45: #{tpu_custom_call.1} parent=43 // pred_check
          %p872 = pneg %p86
        $region46: #{tpu_custom_call.1} parent=43 // pred_check_branch
          %874 = sbr.rel (%p872) target = $region48
        $region47: #{tpu_custom_call.1} parent=43 // pred_region
          %s875 = sand.u32 %s71, 1
          %s876 = scalar_lea.sflag [#allocation4], %s875
          %s877 = sand.u32 %s71, 1
          %s878 = smul.addr %s877, 6
          %s879 = scalar_lea.vmem [#allocation5], %s878
          %880 = dma.done %s876, 96
        $region48: #{tpu_custom_call.1} parent=43 // pred_fallthru
          _
        // Predicated region
        $region49: #{tpu_custom_call.1} parent=43 // pred_check
          %p881 = pneg %p112
        $region50: #{tpu_custom_call.1} parent=43 // pred_check_branch
          %883 = sbr.rel (%p881) target = $region52
        $region51: #{tpu_custom_call.1} parent=43 // pred_region
          %p884 = scmp.lt.s32.totalorder %s26, 1
          %s885 = scalar_select %p884, %s26, 1
          %s886 = smul.addr %s885, 2
          %s887 = smul.addr %s886, 8
          %s888 = scalar_lea.vmem %s2, %s887
        $region52: #{tpu_custom_call.1} parent=43 // pred_fallthru
          _
      $region44: #{tpu_custom_call.1} parent=5 // pred_fallthru
        _
    $region6: #{tpu_custom_call.1} parent=1 // loop_footer
      %s19 = sadd.s32 1, %s15
    $region7: #{tpu_custom_call.1} parent=1 // loop_footer_branch
      %14 = sbr.rel target = $region3
    $region8: #{tpu_custom_call.1} parent=1 // loop_exit
      _
    %889 = vsyncpa [#allocation3], 1
    %s890 = scalar_lea.sflag [#allocation3], 1
    %891 = vsyncpa %s890, 1
    %892 = vsyncpa [#allocation4], 1
    %s893 = scalar_lea.sflag [#allocation4], 1
    %894 = vsyncpa %s893, 1

</llo_original>
